<compile_context>
chip_gen: v6e
topology: v6e:2x2x1
jax: 0.10.0
libtpu: 0.0.40
codegen_flags: <defaults>
</compile_context>

<pallas_src>
import functools

import jax
import jax.numpy as jnp
from jax.experimental import pallas as pl
from jax.experimental.pallas import tpu as pltpu


# ---------------------------------------------------------------------------
# Kernel bodies
# ---------------------------------------------------------------------------

def _normalize(x, src_mean, src_var, w, b, o_ref, *, alpha, eps, inv_h, one_pass):
    """Per-tile math. x is the raw (tr, H) tile; statistics accumulate in f32."""
    xf = x.astype(jnp.float32)
    one_m_a = 1.0 - alpha
    if one_pass:
        # Single sweep: sum(x) and sum(x*x). Removes the full-tile f32 `diff`
        # temporary (VMEM relief on v7x) and one per-element subtract.
        t_mean = jnp.sum(xf, axis=-1, keepdims=True) * inv_h
        t_msq = jnp.sum(xf * xf, axis=-1, keepdims=True) * inv_h
        t_var = jnp.maximum(t_msq - t_mean * t_mean, 0.0)
        r_mean = one_m_a * src_mean + alpha * t_mean
        r_var = one_m_a * src_var + alpha * t_var
        inv_std = jax.lax.rsqrt(r_var + eps)
        y = (xf - r_mean) * inv_std
    else:
        # Two-pass (numerically robust) variance; reuse diff for the output:
        # x - r_mean == diff + (1 - alpha) * (t_mean - src_mean).
        t_mean = jnp.sum(xf, axis=-1, keepdims=True) * inv_h
        diff = xf - t_mean
        t_var = jnp.sum(diff * diff, axis=-1, keepdims=True) * inv_h
        r_var = one_m_a * src_var + alpha * t_var
        inv_std = jax.lax.rsqrt(r_var + eps)
        shift = one_m_a * (t_mean - src_mean)
        y = (diff + shift) * inv_std
    o_ref[...] = (y * w + b).astype(o_ref.dtype)


def _kernel_split(x_ref, sm_ref, sv_ref, w_ref, b_ref, o_ref, *, alpha, eps,
                  inv_h, one_pass):
    _normalize(x_ref[...], sm_ref[...], sv_ref[...], w_ref[...], b_ref[...],
               o_ref, alpha=alpha, eps=eps, inv_h=inv_h, one_pass=one_pass)


def _kernel_fused(x_ref, src_ref, w_ref, b_ref, o_ref, *, alpha, eps, inv_h,
                  one_pass):
    src = src_ref[...]                     # (tr, 2) f32: [:,0]=mean, [:,1]=var
    _normalize(x_ref[...], src[:, 0:1], src[:, 1:2], w_ref[...], b_ref[...],
               o_ref, alpha=alpha, eps=eps, inv_h=inv_h, one_pass=one_pass)


# ---------------------------------------------------------------------------
# Sizing heuristics
# ---------------------------------------------------------------------------

def _chip_profile():
    """Return (vmem_bytes, num_tensorcores), defensively."""
    vmem_bytes = None
    try:
        vmem_bytes = int(pltpu.get_tpu_info().vmem_capacity_bytes)
    except Exception:
        vmem_bytes = None
    kind = ""
    try:
        kind = jax.devices()[0].device_kind.lower()
    except Exception:
        pass
    if vmem_bytes is None:
        vmem_bytes = (64 << 20) if "v7" in kind else (128 << 20)
    num_tc = 2 if ("v7" in kind or vmem_bytes <= (64 << 20)) else 1
    return vmem_bytes, num_tc


def _choose_block_rows(n_rows, h, itemsize, *, vmem_bytes, num_tc, max_rows=2048):
    """Row-tile size: ~8 MiB on 128 MiB-VMEM parts, ~2 MiB on 64 MiB parts;
    multiple of the sublane-pack granularity; on multi-TC chips keep at least
    num_tc grid steps (no clamp at all on single-TC chips)."""
    sub = max(8, 32 // max(1, itemsize))          # 8 f32, 16 bf16, 32 int8/fp8
    target = (8 << 20) if vmem_bytes >= (96 << 20) else (2 << 20)
    rows = max(sub, target // max(1, h * itemsize))
    rows = min(rows, max_rows)
    if num_tc > 1 and n_rows >= 2 * num_tc * sub:
        rows = min(rows, n_rows // num_tc)        # keep >= num_tc grid steps
    rows = min(rows, n_rows)
    rows = max(sub, (rows // sub) * sub)
    return int(rows)


def _spec(shape, index_map, buffers):
    """BlockSpec with optional deeper pipelining (fallback if unsupported)."""
    if buffers > 2:
        try:
            return pl.BlockSpec(shape, index_map, pipeline_mode=pl.Buffered(buffers))
        except TypeError:
            pass
    return pl.BlockSpec(shape, index_map)


# ---------------------------------------------------------------------------
# Wrapper
# ---------------------------------------------------------------------------

def alpha_layer_norm(x, src_mean, src_var, weight, bias, *, alpha, eps=1e-5,
                     block_rows=None, one_pass=None, fuse_stats=None):
    """x: (B, S, H); src_mean/src_var: (B, S, 1); weight/bias: (H,)."""
    B, S, H = x.shape
    N = B * S
    itemsize = jnp.dtype(x.dtype).itemsize

    vmem_bytes, num_tc = _chip_profile()
    if block_rows is None:
        block_rows = _choose_block_rows(N, H, itemsize,
                                        vmem_bytes=vmem_bytes, num_tc=num_tc)
    if one_pass is None:
        # One-pass variance only where it pays: sub-32-bit I/O on small-VMEM
        # (v7x-class) chips.  v5e/v6e stay on the robust two-pass form.
        one_pass = (itemsize < 4) and (vmem_bytes < (96 << 20))
    if fuse_stats is None:
        # Fusing mean/var into one (N,2) stream costs an extra wrapper-side HBM
        # pass; only worth it when H is large enough that it is negligible.
        fuse_stats = H >= 512

    x2 = x.reshape(N, H)
    w2 = weight.reshape(1, H).astype(jnp.float32)
    b2 = bias.reshape(1, H).astype(jnp.float32)

    grid = (pl.cdiv(N, block_rows),)      # ragged tail masked by Pallas

    # ---- VMEM budget (double-buffered tiles + f32 intermediates) ----
    h_pad = -(-H // 128) * 128
    tile_bytes = block_rows * h_pad * itemsize
    stats_bytes = block_rows * 128 * 4 * (1 if fuse_stats else 2)
    wb_bytes = 2 * h_pad * 4
    f32_tmp = (1 if one_pass else 2) * block_rows * h_pad * 4   # upcast x (+ diff)
    vmem_needed = 2 * (2 * tile_bytes + stats_bytes) + wb_bytes + f32_tmp
    cap = min(vmem_bytes - (12 << 20),
              (52 << 20) if vmem_bytes < (96 << 20) else (100 << 20))
    vmem_limit = int(min(max(vmem_needed + (4 << 20), 32 << 20), cap))

    # Deeper pipelining only on big-VMEM single-TC chips with large tiles.
    buffers = 3 if (num_tc == 1 and vmem_bytes >= (96 << 20)
                    and tile_bytes >= (4 << 20)) else 2

    # Advisory cost so XLA schedules around the opaque call.
    bytes_accessed = 2 * N * H * itemsize + 2 * N * 4 + 2 * H * 4
    cost = pl.CostEstimate(flops=10 * N * H, transcendentals=N,
                           bytes_accessed=bytes_accessed)

    kern = _kernel_fused if fuse_stats else _kernel_split
    kernel = functools.partial(kern, alpha=float(alpha), eps=float(eps),
                               inv_h=1.0 / H, one_pass=bool(one_pass))

    in_specs = [_spec((block_rows, H), lambda i: (i, 0), buffers)]   # x rows
    if fuse_stats:
        stats_in = (jnp.concatenate(
            [src_mean.reshape(N, 1), src_var.reshape(N, 1)],
            axis=-1).astype(jnp.float32),)
        in_specs.append(pl.BlockSpec((block_rows, 2), lambda i: (i, 0)))
    else:
        stats_in = (src_mean.reshape(N, 1).astype(jnp.float32),
                    src_var.reshape(N, 1).astype(jnp.float32))
        in_specs.append(pl.BlockSpec((block_rows, 1), lambda i: (i, 0)))
        in_specs.append(pl.BlockSpec((block_rows, 1), lambda i: (i, 0)))
    in_specs.append(pl.BlockSpec((1, H), lambda i: (0, 0)))           # weight
    in_specs.append(pl.BlockSpec((1, H), lambda i: (0, 0)))           # bias

    out = pl.pallas_call(
        kernel,
        out_shape=jax.ShapeDtypeStruct((N, H), x.dtype),
        grid_spec=pltpu.PrefetchScalarGridSpec(
            num_scalar_prefetch=0,
            grid=grid,
            in_specs=in_specs,
            out_specs=_spec((block_rows, H), lambda i: (i, 0), buffers),
        ),
        compiler_params=pltpu.CompilerParams(
            dimension_semantics=("parallel",),
            vmem_limit_bytes=vmem_limit),
        cost_estimate=cost,
    )(x2, *stats_in, w2, b2)

    return out.reshape(B, S, H)


# ---------------------------------------------------------------------------
# Reference + self-test
# ---------------------------------------------------------------------------

def _reference(x, src_mean, src_var, weight, bias, *, alpha, eps=1e-5):
    xf = x.astype(jnp.float32)
    t_mean = jnp.mean(xf, axis=-1, keepdims=True)
    t_var = jnp.mean((xf - t_mean) ** 2, axis=-1, keepdims=True)
    r_mean = (1.0 - alpha) * src_mean + alpha * t_mean
    r_var = (1.0 - alpha) * src_var + alpha * t_var
    return (((xf - r_mean) / jnp.sqrt(r_var + eps))
            * weight.astype(jnp.float32) + bias.astype(jnp.float32))


def _run_case(shape, dtype, alpha, *, atol, rtol, eps=1e-5, **kw):
    B, S, H = shape
    key = jax.random.PRNGKey(0)
    k_x, k_src, k_w, k_b = jax.random.split(key, 4)

    # Target-domain input.
    x = jax.random.normal(k_x, (B, S, H), dtype=jnp.float32)

    # Deterministic "stored" source-domain statistics (what
    # LayerNormWithStoredStats would have recorded on the source domain).
    src = 0.5 * jax.random.normal(k_src, (B, S, H), dtype=jnp.float32) + 0.1
    src_mean = jnp.mean(src, axis=-1, keepdims=True)
    src_var = jnp.mean((src - src_mean) ** 2, axis=-1, keepdims=True)

    # Elementwise-affine parameters of the wrapped LayerNorm (num_features=H).
    weight = 1.0 + 0.02 * jax.random.normal(k_w, (H,), dtype=jnp.float32)
    bias = 0.02 * jax.random.normal(k_b, (H,), dtype=jnp.float32)

    x = x.astype(dtype)
    out = alpha_layer_norm(x, src_mean, src_var, weight, bias,
                           alpha=alpha, eps=eps, **kw)
    out = jax.block_until_ready(out)

    ref = _reference(x, src_mean, src_var, weight, bias, alpha=alpha, eps=eps)
    assert out.shape == (B, S, H)
    assert out.dtype == dtype
    assert jnp.allclose(out.astype(jnp.float32), ref, atol=atol, rtol=rtol), \
        f"mismatch vs reference for shape={shape} dtype={dtype}"


if __name__ == "__main__":
    # Small shape consistent with the module (LayerNorm over hidden dim).
    _run_case((2, 8, 32), jnp.float32, 0.3, atol=1e-5, rtol=1e-5)
    # Ragged row count + non-multiple-of-128 H: exercises the cdiv tail path
    # and the split-stats (two (N,1) inputs) path.
    _run_case((3, 7, 200), jnp.float32, 0.7, atol=1e-5, rtol=1e-5)
    # H >= 512: exercises the fused (N,2) stats path.
    _run_case((2, 4, 512), jnp.float32, 0.25, atol=1e-5, rtol=1e-5)
    # bf16 I/O + explicit one-pass variance (v7x-style path); f32 accumulation.
    _run_case((2, 8, 128), jnp.bfloat16, 0.5, atol=2e-2, rtol=2e-2,
              one_pass=True)
    print("KERNEL_OK")
</pallas_src>

<mosaic_0001>
module attributes {stable_mosaic.version = 11 : i64} {
  func.func @_kernel_split(%arg0: i32, %arg1: memref<16x32xf32, #tpu.memory_space<vmem>>, %arg2: memref<16x1xf32, #tpu.memory_space<vmem>>, %arg3: memref<16x1xf32, #tpu.memory_space<vmem>>, %arg4: memref<1x32xf32, #tpu.memory_space<vmem>>, %arg5: memref<1x32xf32, #tpu.memory_space<vmem>>, %arg6: memref<16x32xf32, #tpu.memory_space<vmem>>) attributes {dimension_semantics = [#tpu.dimension_semantics<parallel>], iteration_bounds = array<i64: 1>, scalar_prefetch = 0 : i64, scratch_operands = 0 : i64, tpu.core_type = #tpu.core_type<tc>, window_params = [{transform_indices = @transform_0, window_bounds = array<i64: 16, 32>}, {transform_indices = @transform_1, window_bounds = array<i64: 16, 1>}, {transform_indices = @transform_2, window_bounds = array<i64: 16, 1>}, {pipeline_mode = #tpu.pipeline_mode<synchronous>, transform_indices = @transform_3, window_bounds = array<i64: 1, 32>}, {pipeline_mode = #tpu.pipeline_mode<synchronous>, transform_indices = @transform_4, window_bounds = array<i64: 1, 32>}, {transform_indices = @transform_5, window_bounds = array<i64: 16, 32>}]} {
    %c0 = arith.constant 0 : index
    %c0_0 = arith.constant 0 : index
    %0 = vector.load %arg1[%c0, %c0_0] : memref<16x32xf32, #tpu.memory_space<vmem>>, vector<16x32xf32>
    %c0_1 = arith.constant 0 : index
    %c0_2 = arith.constant 0 : index
    %1 = vector.load %arg2[%c0_1, %c0_2] : memref<16x1xf32, #tpu.memory_space<vmem>>, vector<16x1xf32>
    %c0_3 = arith.constant 0 : index
    %c0_4 = arith.constant 0 : index
    %2 = vector.load %arg3[%c0_3, %c0_4] : memref<16x1xf32, #tpu.memory_space<vmem>>, vector<16x1xf32>
    %c0_5 = arith.constant 0 : index
    %c0_6 = arith.constant 0 : index
    %3 = vector.load %arg4[%c0_5, %c0_6] : memref<1x32xf32, #tpu.memory_space<vmem>>, vector<1x32xf32>
    %c0_7 = arith.constant 0 : index
    %c0_8 = arith.constant 0 : index
    %4 = vector.load %arg5[%c0_7, %c0_8] : memref<1x32xf32, #tpu.memory_space<vmem>>, vector<1x32xf32>
    %cst = arith.constant dense<0.000000e+00> : vector<16xf32>
    %5 = vector.multi_reduction <add>, %0, %cst [1] : vector<16x32xf32> to vector<16xf32>
    %6 = vector.shape_cast %5 : vector<16xf32> to vector<16x1xf32>
    %cst_9 = arith.constant 3.125000e-02 : f32
    %7 = vector.broadcast %cst_9 : f32 to vector<16x1xf32>
    %8 = arith.mulf %6, %7 : vector<16x1xf32>
    %9 = vector.broadcast %8 : vector<16x1xf32> to vector<16x32xf32>
    %10 = arith.subf %0, %9 : vector<16x32xf32>
    %11 = arith.mulf %10, %10 : vector<16x32xf32>
    %cst_10 = arith.constant dense<0.000000e+00> : vector<16xf32>
    %12 = vector.multi_reduction <add>, %11, %cst_10 [1] : vector<16x32xf32> to vector<16xf32>
    %13 = vector.shape_cast %12 : vector<16xf32> to vector<16x1xf32>
    %cst_11 = arith.constant 3.125000e-02 : f32
    %14 = vector.broadcast %cst_11 : f32 to vector<16x1xf32>
    %15 = arith.mulf %13, %14 : vector<16x1xf32>
    %cst_12 = arith.constant 0.699999988 : f32
    %16 = vector.broadcast %cst_12 : f32 to vector<16x1xf32>
    %17 = arith.mulf %16, %2 : vector<16x1xf32>
    %cst_13 = arith.constant 3.000000e-01 : f32
    %18 = vector.broadcast %cst_13 : f32 to vector<16x1xf32>
    %19 = arith.mulf %18, %15 : vector<16x1xf32>
    %20 = arith.addf %17, %19 : vector<16x1xf32>
    %cst_14 = arith.constant 9.99999974E-6 : f32
    %21 = vector.broadcast %cst_14 : f32 to vector<16x1xf32>
    %22 = arith.addf %20, %21 : vector<16x1xf32>
    %23 = math.rsqrt %22 : vector<16x1xf32>
    %24 = arith.subf %8, %1 : vector<16x1xf32>
    %cst_15 = arith.constant 0.699999988 : f32
    %25 = vector.broadcast %cst_15 : f32 to vector<16x1xf32>
    %26 = arith.mulf %25, %24 : vector<16x1xf32>
    %27 = vector.broadcast %26 : vector<16x1xf32> to vector<16x32xf32>
    %28 = arith.addf %10, %27 : vector<16x32xf32>
    %29 = vector.broadcast %23 : vector<16x1xf32> to vector<16x32xf32>
    %30 = arith.mulf %28, %29 : vector<16x32xf32>
    %31 = vector.broadcast %3 : vector<1x32xf32> to vector<16x32xf32>
    %32 = arith.mulf %30, %31 : vector<16x32xf32>
    %33 = vector.broadcast %4 : vector<1x32xf32> to vector<16x32xf32>
    %34 = arith.addf %32, %33 : vector<16x32xf32>
    %c0_16 = arith.constant 0 : index
    %c0_17 = arith.constant 0 : index
    %35 = vector.load %arg6[%c0_16, %c0_17] : memref<16x32xf32, #tpu.memory_space<vmem>>, vector<16x32xf32>
    tpu.vector_store %arg6[%c0_16, %c0_17], %34 {strides = array<i32>} : memref<16x32xf32, #tpu.memory_space<vmem>>, vector<16x32xf32>,
    return
  }
  func.func @transform_0(%arg0: i32) -> (i32, i32) {
    %c0_i32 = arith.constant 0 : i32
    %c0_i32_0 = arith.constant 0 : i32
    return %arg0, %c0_i32 : i32, i32
  }
  func.func @transform_1(%arg0: i32) -> (i32, i32) {
    %c0_i32 = arith.constant 0 : i32
    %c0_i32_0 = arith.constant 0 : i32
    return %arg0, %c0_i32 : i32, i32
  }
  func.func @transform_2(%arg0: i32) -> (i32, i32) {
    %c0_i32 = arith.constant 0 : i32
    %c0_i32_0 = arith.constant 0 : i32
    return %arg0, %c0_i32 : i32, i32
  }
  func.func @transform_3(%arg0: i32) -> (i32, i32) {
    %c0_i32 = arith.constant 0 : i32
    %c0_i32_0 = arith.constant 0 : i32
    %c0_i32_1 = arith.constant 0 : i32
    return %c0_i32, %c0_i32_0 : i32, i32
  }
  func.func @transform_4(%arg0: i32) -> (i32, i32) {
    %c0_i32 = arith.constant 0 : i32
    %c0_i32_0 = arith.constant 0 : i32
    %c0_i32_1 = arith.constant 0 : i32
    return %c0_i32, %c0_i32_0 : i32, i32
  }
  func.func @transform_5(%arg0: i32) -> (i32, i32) {
    %c0_i32 = arith.constant 0 : i32
    %c0_i32_0 = arith.constant 0 : i32
    return %arg0, %c0_i32 : i32, i32
  }
}

</mosaic_0001>

<llo_original>
// kernel: tpu_custom_call.1
$region0: #{tpu_custom_call.1}
  #allocation0 [shape = 'u32[]', space=smem, size = 0x4, offset = 0x4, fixed_abs, tag = 'smem constant byte address 0x4 - core index']
  #allocation1 [shape = 'u32[144,128]{1,0:T(1,128)}', space=vmem, size = 0x12000, scoped, tag = 'internal scratch']
  %s0 = inlined_call_operand.vmem [shape: f32[16,32], index: 0, kind: input, shape index: {}]
  %s1 = inlined_call_operand.vmem [shape: f32[16,1], index: 1, kind: input, shape index: {}]
  %s2 = inlined_call_operand.vmem [shape: f32[16,1], index: 2, kind: input, shape index: {}]
  %s3 = inlined_call_operand.vmem [shape: f32[1,32], index: 3, kind: input, shape index: {}]
  %s4 = inlined_call_operand.vmem [shape: f32[1,32], index: 4, kind: input, shape index: {}]
  %s5 = inlined_call_operand.hbm [shape: f32[16,32], index: 5, kind: output, shape index: {}]
  %s6 = sld [smem:[#allocation0]]
  $region30: #{tpu_custom_call.1} parent=0
    _
  %s8 = ssub.s32 1, %s6
  %s9 = scalar_select 0, %s8, %s6
  $region1: #{tpu_custom_call.1} parent=0
    #allocation2 [shape = 'u8[8192]{0}', space=vmem, size = 0x2000, scoped, tag = 'output window, operand 0, single buffered']
    #allocation3 [shape = 's32[1]{0}', space=sflag, size = 0x4, scoped, tag = 'scoped memory for tpu_custom_call.1']
    %10 = vsyncpa [#allocation3], 0
    // Predicated region
    $region2: #{tpu_custom_call.1} parent=1 // pred_check
      _
    $region3: #{tpu_custom_call.1} parent=1 // pred_check_branch
      %12 = sbr.rel (0) target = $region5
    $region4: #{tpu_custom_call.1} parent=1 // pred_region
      _
    $region5: #{tpu_custom_call.1} parent=1 // pred_fallthru
      _
    // Predicated region
    $region6: #{tpu_custom_call.1} parent=1 // pred_check
      _
    $region7: #{tpu_custom_call.1} parent=1 // pred_check_branch
      %14 = sbr.rel (0) target = $region9
    $region8: #{tpu_custom_call.1} parent=1 // pred_region
      _
    $region9: #{tpu_custom_call.1} parent=1 // pred_fallthru
      _
    // Predicated region
    $region10: #{tpu_custom_call.1} parent=1 // pred_check
      _
    $region11: #{tpu_custom_call.1} parent=1 // pred_check_branch
      %16 = sbr.rel (0) target = $region13
    $region12: #{tpu_custom_call.1} parent=1 // pred_region
      _
    $region13: #{tpu_custom_call.1} parent=1 // pred_fallthru
      _
    // Predicated region
    $region14: #{tpu_custom_call.1} parent=1 // pred_check
      _
    $region15: #{tpu_custom_call.1} parent=1 // pred_check_branch
      %18 = sbr.rel (0) target = $region17
    $region16: #{tpu_custom_call.1} parent=1 // pred_region
      _
    $region17: #{tpu_custom_call.1} parent=1 // pred_fallthru
      _
    // Predicated region
    $region18: #{tpu_custom_call.1} parent=1 // pred_check
      _
    $region19: #{tpu_custom_call.1} parent=1 // pred_check_branch
      %20 = sbr.rel (0) target = $region21
    $region20: #{tpu_custom_call.1} parent=1 // pred_region
      _
    $region21: #{tpu_custom_call.1} parent=1 // pred_fallthru
      _
    %v21 = vld [vmem:[%s0] sm:$0xff]
    %v22 = vld [vmem:[%s0 + $0x8] sm:$0xff]
    %v23 = vld [vmem:[%s1] sm:$0xff]
    %v24 = vld [vmem:[%s1 + $0x8] sm:$0xff]
    %v25 = vld [vmem:[%s2] sm:$0xff]
    %v26 = vld [vmem:[%s2 + $0x8] sm:$0xff]
    %v27 = vld [vmem:[%s3] sm:$0x1]
    %v28 = vld [vmem:[%s4] sm:$0x1]
    %vm29 = vcmask 261120
    %v30 = vsel %vm29, %v21, 0.0
    %31 = vadd.xlane.f32.xlu0 %v30
    %v32 = vpop.xlane.xlu0 %31
    %v33 = vsel %vm29, %v22, 0.0
    %34 = vadd.xlane.f32.xlu0 %v33
    %v35 = vpop.xlane.xlu0 %34
    %v36 = vmul.f32 %v32, 0.03125
    %v37 = vmul.f32 %v35, 0.03125
    %v38 = vsub.f32 %v21, %v36
    %v39 = vsub.f32 %v22, %v37
    %v40 = vmul.f32 %v38, %v38
    %v41 = vmul.f32 %v39, %v39
    %v42 = vsel %vm29, %v40, 0.0
    %43 = vadd.xlane.f32.xlu0 %v42
    %v44 = vpop.xlane.xlu0 %43
    %v45 = vsel %vm29, %v41, 0.0
    %46 = vadd.xlane.f32.xlu0 %v45
    %v47 = vpop.xlane.xlu0 %46
    %v48 = vmul.f32 %v44, 0.03125
    %v49 = vmul.f32 %v47, 0.03125
    %v50 = vmul.f32 %v25, 0.7
    %v51 = vmul.f32 %v26, 0.7
    %v52 = vmul.f32 %v48, 0.3
    %v53 = vmul.f32 %v49, 0.3
    %v54 = vadd.f32 %v50, %v52
    %v55 = vadd.f32 %v51, %v53
    %v56 = vadd.f32 %v54, 1e-05
    %v57 = vadd.f32 %v55, 1e-05
    %v58 = vrsqrt.pop %v56
    %v59 = vrsqrt.pop %v57
    %v60 = vsub.f32 %v36, %v23
    %v61 = vsub.f32 %v37, %v24
    %v62 = vmul.f32 %v60, 0.7
    %v63 = vmul.f32 %v61, 0.7
    %65 = vset.pattern.permute.xlu0 0
    %66 = vperm.xlu0 %65, %v62
    %v67 = vpop.permute.xlu0 %66
    %70 = vset.pattern.permute.xlu0 0
    %71 = vperm.xlu0 %70, %v63
    %v72 = vpop.permute.xlu0 %71
    %v74 = vadd.f32 %v38, %v67
    %v75 = vadd.f32 %v39, %v72
    %77 = vset.pattern.permute.xlu0 0
    %78 = vperm.xlu0 %77, %v58
    %v79 = vpop.permute.xlu0 %78
    %82 = vset.pattern.permute.xlu0 0
    %83 = vperm.xlu0 %82, %v59
    %v84 = vpop.permute.xlu0 %83
    %v86 = vmul.f32 %v74, %v79
    %v87 = vmul.f32 %v75, %v84
    %v89 = vlaneseq
    %v90 = vshrl.u32 %v89, 7
    %v91 = vsub.s32 0, %v90
    %v92 = vrot.slane %v27, %v91
    %v94 = vmul.f32 %v86, %v92
    %v95 = vmul.f32 %v87, %v92
    %v97 = vlaneseq
    %v98 = vshrl.u32 %v97, 7
    %v99 = vsub.s32 0, %v98
    %v100 = vrot.slane %v28, %v99
    %v102 = vadd.f32 %v94, %v100
    %v103 = vadd.f32 %v95, %v100
    %104 = vst.msk [vmem:[#allocation2] sm:$0xff] %vm29, %v102
    %105 = vst.msk [vmem:[#allocation2 + $0x8] sm:$0xff] %vm29, %v103
    // Predicated region
    $region22: #{tpu_custom_call.1} parent=1 // pred_check
      _
    $region23: #{tpu_custom_call.1} parent=1 // pred_check_branch
      %107 = sbr.rel (0) target = $region25
    $region24: #{tpu_custom_call.1} parent=1 // pred_region
      %s109 = ssub.s32 256, 256
      %110 = vsyncadd [#allocation3], %s109
      %s111 = sshll.u32 [#allocation2], 4
      %s112 = int_to_ptr.vmem [resolvable:$true] %s111
      %117 = dma.vmem_to_hbm [thread:$0]  %s112, 256, %s5, [#allocation3], 128, 128, 8
    $region25: #{tpu_custom_call.1} parent=1 // pred_fallthru
      _
    // Predicated region
    $region26: #{tpu_custom_call.1} parent=1 // pred_check
      _
    $region27: #{tpu_custom_call.1} parent=1 // pred_check_branch
      %119 = sbr.rel (0) target = $region29
    $region28: #{tpu_custom_call.1} parent=1 // pred_region
      %120 = dma.done [#allocation3], 256
    $region29: #{tpu_custom_call.1} parent=1 // pred_fallthru
      _
    %121 = vsyncpa [#allocation3], 1

</llo_original>
